<compile_context>
chip_gen: v5e
topology: v5e:2x2
jax: 0.10.0
libtpu: 0.0.40
codegen_flags: <defaults>
</compile_context>

<pallas_src>
import functools

import numpy as np

import jax
import jax.numpy as jnp
from jax.experimental import pallas as pl
from jax.experimental.pallas import tpu as pltpu

_F32_MIN = float(jnp.finfo(jnp.float32).min)


def _round_up(a, m):
    return ((a + m - 1) // m) * m


def _tpu_defaults():
    """Generation-aware (tm, vmem_limit_bytes).

    v5e/v6e have 128 MiB physical VMEM (default scoped limit is only 16/32
    MiB, so raise it toward ~96 MiB); v7x has 64 MiB per TensorCore (budget
    ~48 MiB).  v6e/v7x MXUs are 2x256x256 -> tm=256; v5e's 4x128x128 is
    already matched by tm=128.
    """
    kind = ""
    try:
        kind = jax.devices()[0].device_kind.lower()
    except Exception:
        pass
    is_v7 = "v7" in kind
    is_v6 = ("v6" in kind) or ("trillium" in kind)
    vmem_phys = None
    try:
        vmem_phys = int(pltpu.get_tpu_info().vmem_capacity_bytes)
    except Exception:
        vmem_phys = None
    if vmem_phys is None:
        vmem_phys = (64 if is_v7 else 128) * 2**20
    if is_v7:
        vmem_limit = (min(vmem_phys, 64 * 2**20) * 3) // 4      # ~48 MiB
    else:
        vmem_limit = min((vmem_phys * 3) // 4, 100 * 2**20)      # ~96 MiB
    tm = 256 if (is_v6 or is_v7) else 128
    return tm, int(vmem_limit)


def _pick_ts(d_sae, d_in_pad, tm, in_itemsize, kpad, vmem_limit):
    """Largest multiple-of-128 d_sae tile fitting the per-step VMEM budget."""
    d_sae_128 = _round_up(d_sae, 128)
    budget = vmem_limit // 2                 # headroom for Mosaic scratch/spills
    # Fixed per step: double-buffered x tile + running top-k scratch.
    fixed = 2 * tm * d_in_pad * in_itemsize + tm * kpad * 4
    # Per d_sae lane: wT (2 bufs) + bias (2) + dense z out (2) + live selection
    # temporaries (work / compare / select, ~3 copies).
    per_lane = 2 * d_in_pad * in_itemsize + 2 * 4 + 2 * tm * 4 + 3 * tm * 4
    avail = max(budget - fixed, per_lane * 128)
    ts = (avail // per_lane) // 128 * 128
    return int(max(128, min(d_sae_128, ts)))


def _encode_threshold_kernel(x_ref, w_ref, b_ref, z_ref, t_ref, rv_ref, *,
                             k, select_dtype, unroll):
    """Phase 1: z tile + running top-k values; threshold at the last d_sae tile."""
    j = pl.program_id(1)

    @pl.when(j == 0)
    def _init():
        rv_ref[...] = jnp.full_like(rv_ref, -jnp.inf)

    # MXU matmul with f32 accumulation (operands may be bf16 for 2x MXU rate).
    z = jnp.dot(x_ref[...], w_ref[...], preferred_element_type=jnp.float32)
    z = z + b_ref[...].astype(jnp.float32)                 # (tm, ts) f32
    z_ref[...] = z.astype(z_ref.dtype)                      # lane-dense store

    tm, kpad = rv_ref.shape
    # Fold this tile into the running top-k values (threshold scheme, values
    # only).  Per round: 1 XLU max-reduce + 1 eq + 1 select over (tm, kpad+ts)
    # plus a small (tm, kpad) placement pass.
    work = jnp.concatenate(
        [rv_ref[...].astype(select_dtype), z.astype(select_dtype)], axis=-1)
    # Hoisted out of the k loop (JAX does not CSE broadcast_in_dim).
    colk = jax.lax.broadcasted_iota(jnp.int32, (1, kpad), 1)
    new_rv = jnp.full((tm, kpad), -jnp.inf, dtype=select_dtype)

    def one_round(r, carry):
        work, new_rv = carry
        m = jnp.max(work, axis=-1, keepdims=True)           # (tm, 1)
        new_rv = jnp.where(colk == r, m, new_rv)             # r-th largest so far
        # NOTE: masks *all* positions tying with m; exact ties are measure-zero
        # for real f32 activations (see module docstring).
        work = jnp.where(work == m, -jnp.inf, work)
        return work, new_rv

    if k <= 16:
        carry = (work, new_rv)
        for r in range(k):                                  # full static unroll
            carry = one_round(r, carry)
        new_rv = carry[1]
    else:
        _, new_rv = jax.lax.fori_loop(0, k, one_round, (work, new_rv),
                                      unroll=unroll)

    rv_ref[...] = new_rv.astype(rv_ref.dtype)

    @pl.when(j == pl.num_programs(1) - 1)
    def _finalize():
        # Per-row top-k threshold = k-th largest value over all of d_sae.
        t_ref[...] = new_rv[:, k - 1:k].astype(t_ref.dtype)


def _apply_topk_mask_kernel(z_ref, t_ref, o_ref):
    """Phase 2: dense result = where(z >= thresh, relu(z), 0)."""
    z = z_ref[...]
    t = t_ref[...].astype(z.dtype)                           # (tm, 1)
    o_ref[...] = jnp.where(z >= t, jnp.maximum(z, 0.0), 0.0).astype(o_ref.dtype)


def prepare_topk_encoder_params(W_enc, b_enc):
    """One-time parameter prep: materialize W_enc.T (d_in, d_sae) so no
    per-call HBM transpose is paid; keep the bias as a flat (d_sae,) vector."""
    return jnp.asarray(W_enc).T, jnp.asarray(b_enc)


def topk_encoder(x, wT, b_enc, k, *, tm=None, ts=None, matmul_dtype=None,
                 select_dtype=jnp.float32, unroll=4):
    """TopKEncoder.forward.

    x: (batch, d_in); wT: (d_in, d_sae) = W_enc.T; b_enc: (d_sae,).
    matmul_dtype: optional bf16 MXU operands (accumulation stays f32).
    select_dtype: dtype of the top-k selection passes.  jnp.bfloat16 halves the
        dominant VPU work on v6e/v7x (native bf16 VPU) but may merge
        activations within one bf16 ulp near the threshold; keep f32 on v5e or
        wherever bit-exact torch.topk behaviour is required.
    """
    batch, d_in = x.shape
    d_in_w, d_sae = wT.shape
    assert d_in == d_in_w, "x / W_enc.T shape mismatch"
    assert 1 <= k <= d_sae
    out_dtype = x.dtype

    tm_default, vmem_limit = _tpu_defaults()
    if tm is None:
        tm = tm_default
    tm = _round_up(max(8, min(tm, _round_up(batch, 8))), 8)
    grid_m = pl.cdiv(batch, tm)
    padded_batch = grid_m * tm

    kpad = _round_up(k, 128)
    d_in_pad = _round_up(d_in, 128)        # MXU K / lane-tiling alignment
    in_itemsize = np.dtype(matmul_dtype).itemsize if matmul_dtype is not None \
        else np.dtype(x.dtype).itemsize
    if ts is None:
        ts = _pick_ts(d_sae, d_in_pad, tm, in_itemsize, kpad, vmem_limit)
    ts = _round_up(min(int(ts), _round_up(d_sae, 128)), 128)
    grid_s = pl.cdiv(d_sae, ts)
    d_sae_pad = grid_s * ts

    # Zero-pad x / wT; pad bias columns with a huge negative so padded
    # features can never enter the top-k.
    x_in = jnp.pad(x, ((0, padded_batch - batch), (0, d_in_pad - d_in)))
    w_in = jnp.pad(wT, ((0, d_in_pad - d_in), (0, d_sae_pad - d_sae)))
    b_in = jnp.pad(b_enc.astype(jnp.float32), (0, d_sae_pad - d_sae),
                   constant_values=_F32_MIN).reshape(1, d_sae_pad)
    if matmul_dtype is not None:
        x_in = x_in.astype(matmul_dtype)
        w_in = w_in.astype(matmul_dtype)

    # ---- Phase 1: dense z tiles + per-row top-k threshold -------------------
    kernel1 = functools.partial(_encode_threshold_kernel, k=int(k),
                                select_dtype=select_dtype, unroll=int(unroll))
    z_dense, thresh = pl.pallas_call(
        kernel1,
        out_shape=(
            jax.ShapeDtypeStruct((padded_batch, d_sae_pad), jnp.float32),
            jax.ShapeDtypeStruct((padded_batch, 1), jnp.float32),
        ),
        grid_spec=pltpu.PrefetchScalarGridSpec(
            num_scalar_prefetch=0,
            grid=(grid_m, grid_s),
            in_specs=[
                pl.BlockSpec((tm, d_in_pad), lambda i, j: (i, 0)),
                pl.BlockSpec((d_in_pad, ts), lambda i, j: (0, j)),
                pl.BlockSpec((1, ts), lambda i, j: (0, j)),
            ],
            out_specs=[
                pl.BlockSpec((tm, ts), lambda i, j: (i, j)),
                pl.BlockSpec((tm, 1), lambda i, j: (i, 0)),
            ],
            scratch_shapes=[pltpu.VMEM((tm, kpad), jnp.float32)],
        ),
        compiler_params=pltpu.CompilerParams(
            dimension_semantics=("parallel", "arbitrary"),
            vmem_limit_bytes=int(vmem_limit),
        ),
    )(x_in, w_in, b_in)

    # ---- Phase 2: dense result = where(z >= thresh, relu(z), 0) -------------
    alias = {0: 0} if np.dtype(out_dtype) == np.dtype(np.float32) else {}
    result = pl.pallas_call(
        _apply_topk_mask_kernel,
        out_shape=jax.ShapeDtypeStruct((padded_batch, d_sae_pad), out_dtype),
        grid_spec=pltpu.PrefetchScalarGridSpec(
            num_scalar_prefetch=0,
            grid=(grid_m, grid_s),
            in_specs=[
                pl.BlockSpec((tm, ts), lambda i, j: (i, j)),
                pl.BlockSpec((tm, 1), lambda i, j: (i, 0)),
            ],
            out_specs=pl.BlockSpec((tm, ts), lambda i, j: (i, j)),
        ),
        compiler_params=pltpu.CompilerParams(
            dimension_semantics=("parallel", "parallel"),
            vmem_limit_bytes=int(vmem_limit),
        ),
        input_output_aliases=alias,
    )(z_dense, thresh)

    return result[:batch, :d_sae]


def topk_encoder_ref(x, wT, b_enc, k):
    """Pure-JAX reference (dense scatter output) for correctness checks."""
    z = jnp.dot(x, wT, preferred_element_type=jnp.float32) + b_enc
    vals, idxs = jax.lax.top_k(z, k)
    vals = jnp.maximum(vals, 0.0)
    return jax.vmap(lambda r, i, v: r.at[i].set(v))(jnp.zeros_like(z), idxs, vals)


if __name__ == "__main__":
    key = jax.random.PRNGKey(0)

    def make_params(pkey, d_sae, d_in, init_norm=1.0, bias_scale=0.0):
        kw, kb = jax.random.split(pkey)
        W = jax.random.normal(kw, (d_sae, d_in), dtype=jnp.float32)
        W = W / jnp.linalg.norm(W, axis=-1, keepdims=True) * init_norm
        b = bias_scale * jax.random.normal(kb, (d_sae,), dtype=jnp.float32)
        return W, b

    # ---------------- Test A: small shapes, strict elementwise check --------
    batch, d_in, d_sae, k = 8, 32, 256, 4
    ka, kxa = jax.random.split(key)
    W_a, b_a = make_params(ka, d_sae, d_in)
    x_a = jax.random.normal(kxa, (batch, d_in), dtype=jnp.float32)
    wT_a, bb_a = prepare_topk_encoder_params(W_a, b_a)
    out_a = jax.block_until_ready(topk_encoder(x_a, wT_a, bb_a, k))
    ref_a = topk_encoder_ref(x_a, wT_a, bb_a, k)
    assert out_a.shape == (batch, d_sae)
    assert jnp.allclose(out_a, ref_a, atol=1e-5, rtol=1e-5), "Test A mismatch"
    assert int(jnp.max(jnp.sum(out_a != 0, axis=-1))) <= k

    # ---- Test B: d_sae tiling (2 tiles), batch/d_in/d_sae padding, fori path
    batch_b, d_in_b, d_sae_b, k_b = 200, 100, 500, 24
    key_b = jax.random.fold_in(key, 123)
    kpb, kxb = jax.random.split(key_b)
    W_b, b_b = make_params(kpb, d_sae_b, d_in_b, bias_scale=0.1)
    x_b = jax.random.normal(kxb, (batch_b, d_in_b), dtype=jnp.float32)
    wT_b, bb_b = prepare_topk_encoder_params(W_b, b_b)
    out_b = jax.block_until_ready(
        topk_encoder(x_b, wT_b, bb_b, k_b, tm=128, ts=256))
    ref_b = topk_encoder_ref(x_b, wT_b, bb_b, k_b)
    assert out_b.shape == (batch_b, d_sae_b)
    assert bool(jnp.all(out_b >= 0))
    assert int(jnp.max(jnp.sum(out_b != 0, axis=-1))) <= k_b
    # Robust to near-threshold flips from f32 reassociation.
    assert jnp.allclose(jnp.sort(out_b, axis=-1), jnp.sort(ref_b, axis=-1),
                        atol=1e-3, rtol=1e-3), "Test B value mismatch"
    assert float(jnp.mean((out_b != 0) == (ref_b != 0))) > 0.999

    # ------- Test C: bf16 MXU operands, f32 accumulation + f32 selection ----
    out_c = jax.block_until_ready(
        topk_encoder(x_b, wT_b, bb_b, k_b, tm=128, ts=256,
                     matmul_dtype=jnp.bfloat16))
    assert out_c.shape == (batch_b, d_sae_b)
    assert int(jnp.max(jnp.sum(out_c != 0, axis=-1))) <= k_b
    assert bool(jnp.all(out_c >= 0))
    assert jnp.allclose(jnp.sort(out_c, axis=-1), jnp.sort(ref_b, axis=-1),
                        atol=0.1, rtol=0.05), "Test C (bf16 matmul) mismatch"

    # ------- Test D: bf16 selection fast path (v6e/v7x only, per review) ----
    kind = ""
    try:
        kind = jax.devices()[0].device_kind.lower()
    except Exception:
        pass
    if ("v6" in kind) or ("v7" in kind) or ("trillium" in kind):
        out_d = jax.block_until_ready(
            topk_encoder(x_a, wT_a, bb_a, k, select_dtype=jnp.bfloat16))
        z_full = jnp.dot(x_a, wT_a, preferred_element_type=jnp.float32) + bb_a
        nz = out_d != 0
        assert out_d.shape == (batch, d_sae)
        assert bool(jnp.all(out_d >= 0))
        # bf16 thresholding can merge activations within one bf16 ulp, so the
        # nonzero count may drift slightly above k; values stay exact f32.
        assert int(jnp.max(jnp.sum(nz, axis=-1))) <= k + 16
        assert jnp.allclose(out_d, jnp.where(nz, jnp.maximum(z_full, 0.0), 0.0),
                            atol=1e-4, rtol=1e-4), "Test D value mismatch"
        # Clearly-above-threshold (top-2, positive) features are always kept.
        top2 = jax.lax.top_k(z_full, 2)[0][:, -1:]
        keep2 = (z_full >= top2) & (z_full > 0)
        assert bool(jnp.all(~keep2 | nz)), "Test D dropped a dominant feature"

    print("KERNEL_OK")
</pallas_src>

<mosaic_0001>
module attributes {stable_mosaic.version = 11 : i64} {
  func.func @_encode_threshold_kernel(%arg0: i32, %arg1: i32, %arg2: memref<8x128xf32, #tpu.memory_space<vmem>>, %arg3: memref<128x256xf32, #tpu.memory_space<vmem>>, %arg4: memref<1x256xf32, #tpu.memory_space<vmem>>, %arg5: memref<8x256xf32, #tpu.memory_space<vmem>>, %arg6: memref<8x1xf32, #tpu.memory_space<vmem>>, %arg7: memref<8x128xf32, #tpu.memory_space<vmem>>) attributes {dimension_semantics = [#tpu.dimension_semantics<parallel>, #tpu.dimension_semantics<arbitrary>], iteration_bounds = array<i64: 1, 1>, scalar_prefetch = 0 : i64, scratch_operands = 1 : i64, tpu.core_type = #tpu.core_type<tc>, window_params = [{transform_indices = @transform_0, window_bounds = array<i64: 8, 128>}, {transform_indices = @transform_1, window_bounds = array<i64: 128, 256>}, {transform_indices = @transform_2, window_bounds = array<i64: 1, 256>}, {transform_indices = @transform_3, window_bounds = array<i64: 8, 256>}, {transform_indices = @transform_4, window_bounds = array<i64: 8, 1>}]} {
    %c0_i32 = arith.constant 0 : i32
    %0 = arith.cmpi eq, %arg1, %c0_i32 : i32
    %1 = arith.extui %0 : i1 to i32
    %c0_i32_0 = arith.constant 0 : i32
    %2 = arith.cmpi ne, %1, %c0_i32_0 : i32
    scf.if %2 {
      %cst_23 = arith.constant 0xFF800000 : f32
      %66 = vector.broadcast %cst_23 : f32 to vector<8x128xf32>
      %c0_24 = arith.constant 0 : index
      %c0_25 = arith.constant 0 : index
      %67 = vector.load %arg7[%c0_24, %c0_25] : memref<8x128xf32, #tpu.memory_space<vmem>>, vector<8x128xf32>
      tpu.vector_store %arg7[%c0_24, %c0_25], %66 {strides = array<i32>} : memref<8x128xf32, #tpu.memory_space<vmem>>, vector<8x128xf32>,
    } else {
    }
    %c0 = arith.constant 0 : index
    %c0_1 = arith.constant 0 : index
    %3 = vector.load %arg2[%c0, %c0_1] : memref<8x128xf32, #tpu.memory_space<vmem>>, vector<8x128xf32>
    %c0_2 = arith.constant 0 : index
    %c0_3 = arith.constant 0 : index
    %4 = vector.load %arg3[%c0_2, %c0_3] : memref<128x256xf32, #tpu.memory_space<vmem>>, vector<128x256xf32>
    %cst = arith.constant dense<0.000000e+00> : vector<8x256xf32>
    %5 = tpu.matmul %3, %4, %cst {dimension_numbers = #tpu.dot_dimension_numbers<[1], [0], [0], [1], [0, 0, 1, 1], [], []>} : vector<8x128xf32>, vector<128x256xf32>, vector<8x256xf32> -> vector<8x256xf32>
    %c0_4 = arith.constant 0 : index
    %c0_5 = arith.constant 0 : index
    %6 = vector.load %arg4[%c0_4, %c0_5] : memref<1x256xf32, #tpu.memory_space<vmem>>, vector<1x256xf32>
    %7 = vector.broadcast %6 : vector<1x256xf32> to vector<8x256xf32>
    %8 = arith.addf %5, %7 : vector<8x256xf32>
    %c0_6 = arith.constant 0 : index
    %c0_7 = arith.constant 0 : index
    %9 = vector.load %arg5[%c0_6, %c0_7] : memref<8x256xf32, #tpu.memory_space<vmem>>, vector<8x256xf32>
    tpu.vector_store %arg5[%c0_6, %c0_7], %8 {strides = array<i32>} : memref<8x256xf32, #tpu.memory_space<vmem>>, vector<8x256xf32>,
    %c0_8 = arith.constant 0 : index
    %c0_9 = arith.constant 0 : index
    %10 = vector.load %arg7[%c0_8, %c0_9] : memref<8x128xf32, #tpu.memory_space<vmem>>, vector<8x128xf32>
    %11 = tpu.concatenate %10, %8 in 1 : vector<8x128xf32>, vector<8x256xf32> -> vector<8x384xf32>
    %12 = tpu.iota {dimensions = array<i32: 1>} : vector<1x128xi32>
    %cst_10 = arith.constant 0xFF800000 : f32
    %13 = vector.broadcast %cst_10 : f32 to vector<8x128xf32>
    %cst_11 = arith.constant dense<0xFF800000> : vector<8xf32>
    %14 = vector.multi_reduction <maximumf>, %11, %cst_11 [1] : vector<8x384xf32> to vector<8xf32>
    %15 = vector.shape_cast %14 : vector<8xf32> to vector<8x1xf32>
    %c0_i32_12 = arith.constant 0 : i32
    %16 = vector.broadcast %c0_i32_12 : i32 to vector<1x128xi32>
    %17 = arith.cmpi eq, %12, %16 : vector<1x128xi32>
    %18 = vector.shape_cast %17 : vector<1x128xi1> to vector<1x128xi1>
    %19 = vector.broadcast %18 : vector<1x128xi1> to vector<8x128xi1>
    %20 = vector.shape_cast %15 : vector<8x1xf32> to vector<8x1xf32>
    %21 = vector.broadcast %20 : vector<8x1xf32> to vector<8x128xf32>
    %22 = arith.select %19, %21, %13 : vector<8x128xi1>, vector<8x128xf32>
    %23 = vector.broadcast %15 : vector<8x1xf32> to vector<8x384xf32>
    %24 = arith.cmpf oeq, %11, %23 : vector<8x384xf32>
    %cst_13 = arith.constant 0xFF800000 : f32
    %25 = vector.broadcast %cst_13 : f32 to vector<8x384xf32>
    %26 = arith.select %24, %25, %11 : vector<8x384xi1>, vector<8x384xf32>
    %cst_14 = arith.constant dense<0xFF800000> : vector<8xf32>
    %27 = vector.multi_reduction <maximumf>, %26, %cst_14 [1] : vector<8x384xf32> to vector<8xf32>
    %28 = vector.shape_cast %27 : vector<8xf32> to vector<8x1xf32>
    %c1_i32 = arith.constant 1 : i32
    %29 = vector.broadcast %c1_i32 : i32 to vector<1x128xi32>
    %30 = arith.cmpi eq, %12, %29 : vector<1x128xi32>
    %31 = vector.shape_cast %30 : vector<1x128xi1> to vector<1x128xi1>
    %32 = vector.broadcast %31 : vector<1x128xi1> to vector<8x128xi1>
    %33 = vector.shape_cast %28 : vector<8x1xf32> to vector<8x1xf32>
    %34 = vector.broadcast %33 : vector<8x1xf32> to vector<8x128xf32>
    %35 = arith.select %32, %34, %22 : vector<8x128xi1>, vector<8x128xf32>
    %36 = vector.broadcast %28 : vector<8x1xf32> to vector<8x384xf32>
    %37 = arith.cmpf oeq, %26, %36 : vector<8x384xf32>
    %cst_15 = arith.constant 0xFF800000 : f32
    %38 = vector.broadcast %cst_15 : f32 to vector<8x384xf32>
    %39 = arith.select %37, %38, %26 : vector<8x384xi1>, vector<8x384xf32>
    %cst_16 = arith.constant dense<0xFF800000> : vector<8xf32>
    %40 = vector.multi_reduction <maximumf>, %39, %cst_16 [1] : vector<8x384xf32> to vector<8xf32>
    %41 = vector.shape_cast %40 : vector<8xf32> to vector<8x1xf32>
    %c2_i32 = arith.constant 2 : i32
    %42 = vector.broadcast %c2_i32 : i32 to vector<1x128xi32>
    %43 = arith.cmpi eq, %12, %42 : vector<1x128xi32>
    %44 = vector.shape_cast %43 : vector<1x128xi1> to vector<1x128xi1>
    %45 = vector.broadcast %44 : vector<1x128xi1> to vector<8x128xi1>
    %46 = vector.shape_cast %41 : vector<8x1xf32> to vector<8x1xf32>
    %47 = vector.broadcast %46 : vector<8x1xf32> to vector<8x128xf32>
    %48 = arith.select %45, %47, %35 : vector<8x128xi1>, vector<8x128xf32>
    %49 = vector.broadcast %41 : vector<8x1xf32> to vector<8x384xf32>
    %50 = arith.cmpf oeq, %39, %49 : vector<8x384xf32>
    %cst_17 = arith.constant 0xFF800000 : f32
    %51 = vector.broadcast %cst_17 : f32 to vector<8x384xf32>
    %52 = arith.select %50, %51, %39 : vector<8x384xi1>, vector<8x384xf32>
    %cst_18 = arith.constant dense<0xFF800000> : vector<8xf32>
    %53 = vector.multi_reduction <maximumf>, %52, %cst_18 [1] : vector<8x384xf32> to vector<8xf32>
    %54 = vector.shape_cast %53 : vector<8xf32> to vector<8x1xf32>
    %c3_i32 = arith.constant 3 : i32
    %55 = vector.broadcast %c3_i32 : i32 to vector<1x128xi32>
    %56 = arith.cmpi eq, %12, %55 : vector<1x128xi32>
    %57 = vector.shape_cast %56 : vector<1x128xi1> to vector<1x128xi1>
    %58 = vector.broadcast %57 : vector<1x128xi1> to vector<8x128xi1>
    %59 = vector.shape_cast %54 : vector<8x1xf32> to vector<8x1xf32>
    %60 = vector.broadcast %59 : vector<8x1xf32> to vector<8x128xf32>
    %61 = arith.select %58, %60, %48 : vector<8x128xi1>, vector<8x128xf32>
    %c0_19 = arith.constant 0 : index
    %c0_20 = arith.constant 0 : index
    %62 = vector.load %arg7[%c0_19, %c0_20] : memref<8x128xf32, #tpu.memory_space<vmem>>, vector<8x128xf32>
    tpu.vector_store %arg7[%c0_19, %c0_20], %61 {strides = array<i32>} : memref<8x128xf32, #tpu.memory_space<vmem>>, vector<8x128xf32>,
    %c0_i32_21 = arith.constant 0 : i32
    %63 = arith.cmpi eq, %arg1, %c0_i32_21 : i32
    %64 = arith.extui %63 : i1 to i32
    %c0_i32_22 = arith.constant 0 : i32
    %65 = arith.cmpi ne, %64, %c0_i32_22 : i32
    scf.if %65 {
      %66 = vector.extract_strided_slice %61 {offsets = [0, 3], sizes = [8, 1], strides = [1, 1]} : vector<8x128xf32> to vector<8x1xf32>
      %c0_23 = arith.constant 0 : index
      %c0_24 = arith.constant 0 : index
      %67 = vector.load %arg6[%c0_23, %c0_24] : memref<8x1xf32, #tpu.memory_space<vmem>>, vector<8x1xf32>
      tpu.vector_store %arg6[%c0_23, %c0_24], %66 {strides = array<i32>} : memref<8x1xf32, #tpu.memory_space<vmem>>, vector<8x1xf32>,
    } else {
    }
    return
  }
  func.func @transform_0(%arg0: i32, %arg1: i32) -> (i32, i32) {
    %c0_i32 = arith.constant 0 : i32
    %c0_i32_0 = arith.constant 0 : i32
    return %arg0, %c0_i32 : i32, i32
  }
  func.func @transform_1(%arg0: i32, %arg1: i32) -> (i32, i32) {
    %c0_i32 = arith.constant 0 : i32
    %c0_i32_0 = arith.constant 0 : i32
    return %c0_i32, %arg1 : i32, i32
  }
  func.func @transform_2(%arg0: i32, %arg1: i32) -> (i32, i32) {
    %c0_i32 = arith.constant 0 : i32
    %c0_i32_0 = arith.constant 0 : i32
    return %c0_i32, %arg1 : i32, i32
  }
  func.func @transform_3(%arg0: i32, %arg1: i32) -> (i32, i32) {
    %c0_i32 = arith.constant 0 : i32
    return %arg0, %arg1 : i32, i32
  }
  func.func @transform_4(%arg0: i32, %arg1: i32) -> (i32, i32) {
    %c0_i32 = arith.constant 0 : i32
    %c0_i32_0 = arith.constant 0 : i32
    return %arg0, %c0_i32 : i32, i32
  }
}

</mosaic_0001>

<llo_original>
// kernel: tpu_custom_call.1
$region0: #{tpu_custom_call.1}
  #allocation0 [shape = 'u32[]', space=smem, size = 0x4, offset = 0x4, fixed_abs, tag = 'smem constant byte address 0x4 - core index']
  #allocation1 [shape = 'u32[72,128]{1,0:T(1,128)}', space=vmem, size = 0x9000, scoped, tag = 'internal scratch']
  #allocation2 [shape = 'f32[8,128]{1,0:T(8,128)}', space=vmem, size = 0x1000, scoped, tag = 'scratch operand']
  %s0 = inlined_call_operand.hbm [shape: f32[8,128], index: 0, kind: input, shape index: {}]
  %s1 = inlined_call_operand.hbm [shape: f32[128,256], index: 1, kind: input, shape index: {}]
  %s2 = inlined_call_operand.hbm [shape: f32[1,256], index: 2, kind: input, shape index: {}]
  %s3 = inlined_call_operand.hbm [shape: f32[8,256], index: 3, kind: output, shape index: {0}]
  %s4 = inlined_call_operand.vmem [shape: f32[8,1], index: 4, kind: output, shape index: {1}]
  %5 = xla_tuple %s3, %s4
  %s6 = sld [smem:[#allocation0]]
  $region50: #{tpu_custom_call.1} parent=0
    _
  %s8 = ssub.s32 1, %s6
  %s9 = scalar_select 0, %s8, %s6
  $region1: #{tpu_custom_call.1} parent=0
    #allocation3 [shape = 'u8[4096]{0}', space=vmem, size = 0x1000, scoped, tag = 'input window, operand 0, single buffered']
    #allocation4 [shape = 's32[1]{0}', space=sflag, size = 0x4, scoped, tag = 'scoped memory for tpu_custom_call.1']
    #allocation5 [shape = 's32[1]{0}', space=sflag, size = 0x4, scoped, tag = 'scoped memory for tpu_custom_call.1']
    #allocation6 [shape = 'u8[131072]{0}', space=vmem, size = 0x20000, scoped, tag = 'input window, operand 1, single buffered']
    #allocation7 [shape = 's32[1]{0}', space=sflag, size = 0x4, scoped, tag = 'scoped memory for tpu_custom_call.1']
    #allocation8 [shape = 'u8[1024]{0}', space=vmem, size = 0x400, scoped, tag = 'input window, operand 2, single buffered']
    #allocation9 [shape = 'u8[8192]{0}', space=vmem, size = 0x2000, scoped, tag = 'output window, operand 0, single buffered']
    %10 = vsyncpa [#allocation4], 0
    %11 = vsyncpa [#allocation7], 0
    %12 = vsyncpa [#allocation5], 0
    // Predicated region
    $region2: #{tpu_custom_call.1} parent=1 // pred_check
      _
    $region3: #{tpu_custom_call.1} parent=1 // pred_check_branch
      %14 = sbr.rel (0) target = $region5
    $region4: #{tpu_custom_call.1} parent=1 // pred_region
      %16 = vsyncadd [#allocation4], 0
      %s18 = sshll.u32 %s0, 4
      %s19 = int_to_ptr.hbm [resolvable:$true] %s18
      %s20 = sshll.u32 [#allocation3], 4
      %s21 = int_to_ptr.vmem [resolvable:$true] %s20
      %23 = dma.hbm_to_vmem [thread:$0]  %s19, 128, %s21, [#allocation4]
    $region5: #{tpu_custom_call.1} parent=1 // pred_fallthru
      _
    // Predicated region
    $region6: #{tpu_custom_call.1} parent=1 // pred_check
      _
    $region7: #{tpu_custom_call.1} parent=1 // pred_check_branch
      %25 = sbr.rel (0) target = $region9
    $region8: #{tpu_custom_call.1} parent=1 // pred_region
      %27 = vsyncadd [#allocation7], 0
      %s28 = sshll.u32 %s1, 4
      %s29 = int_to_ptr.hbm [resolvable:$true] %s28
      %s30 = sshll.u32 [#allocation6], 4
      %s31 = int_to_ptr.vmem [resolvable:$true] %s30
      %36 = dma.hbm_to_vmem [thread:$0]  %s29, 4096, %s31, [#allocation7], 256, 256, 16
    $region9: #{tpu_custom_call.1} parent=1 // pred_fallthru
      _
    // Predicated region
    $region10: #{tpu_custom_call.1} parent=1 // pred_check
      _
    $region11: #{tpu_custom_call.1} parent=1 // pred_check_branch
      %38 = sbr.rel (0) target = $region13
    $region12: #{tpu_custom_call.1} parent=1 // pred_region
      %40 = vsyncadd [#allocation7], 0
      %s42 = sshll.u32 %s2, 4
      %s43 = int_to_ptr.hbm [resolvable:$true] %s42
      %s44 = sshll.u32 [#allocation8], 4
      %s45 = int_to_ptr.vmem [resolvable:$true] %s44
      %47 = dma.hbm_to_vmem [thread:$0]  %s43, 32, %s45, [#allocation7]
    $region13: #{tpu_custom_call.1} parent=1 // pred_fallthru
      _
    // Predicated region
    $region14: #{tpu_custom_call.1} parent=1 // pred_check
      _
    $region15: #{tpu_custom_call.1} parent=1 // pred_check_branch
      %49 = sbr.rel (0) target = $region17
    $region16: #{tpu_custom_call.1} parent=1 // pred_region
      %51 = dma.done [#allocation4], 128
    $region17: #{tpu_custom_call.1} parent=1 // pred_fallthru
      _
    // Predicated region
    $region18: #{tpu_custom_call.1} parent=1 // pred_check
      _
    $region19: #{tpu_custom_call.1} parent=1 // pred_check_branch
      %53 = sbr.rel (0) target = $region21
    $region20: #{tpu_custom_call.1} parent=1 // pred_region
      %55 = dma.done [#allocation7], 4096
    $region21: #{tpu_custom_call.1} parent=1 // pred_fallthru
      _
    // Predicated region
    $region22: #{tpu_custom_call.1} parent=1 // pred_check
      _
    $region23: #{tpu_custom_call.1} parent=1 // pred_check_branch
      %57 = sbr.rel (0) target = $region25
    $region24: #{tpu_custom_call.1} parent=1 // pred_region
      %59 = dma.done [#allocation7], 32
    $region25: #{tpu_custom_call.1} parent=1 // pred_fallthru
      _
    %p60 = scmp.eq.s32.totalorder 0, 0
    // Predicated region
    $region26: #{tpu_custom_call.1} parent=1 // pred_check
      %p61 = pneg %p60
    $region27: #{tpu_custom_call.1} parent=1 // pred_check_branch
      %63 = sbr.rel (%p61) target = $region29
    $region28: #{tpu_custom_call.1} parent=1 // pred_region
      %64 = vst [vmem:[#allocation2] sm:$0xff] -inf
    $region29: #{tpu_custom_call.1} parent=1 // pred_fallthru
      _
    %v65 = vld [vmem:[#allocation3] sm:$0xff]
    %v66 = vld [vmem:[#allocation6] sm:$0xff]
    %v67 = vld [vmem:[#allocation6 + $0x8] sm:$0xff]
    %v68 = vld [vmem:[#allocation6 + $0x10] sm:$0xff]
    %v69 = vld [vmem:[#allocation6 + $0x18] sm:$0xff]
    %v70 = vld [vmem:[#allocation6 + $0x20] sm:$0xff]
    %v71 = vld [vmem:[#allocation6 + $0x28] sm:$0xff]
    %v72 = vld [vmem:[#allocation6 + $0x30] sm:$0xff]
    %v73 = vld [vmem:[#allocation6 + $0x38] sm:$0xff]
    %v74 = vld [vmem:[#allocation6 + $0x40] sm:$0xff]
    %v75 = vld [vmem:[#allocation6 + $0x48] sm:$0xff]
    %v76 = vld [vmem:[#allocation6 + $0x50] sm:$0xff]
    %v77 = vld [vmem:[#allocation6 + $0x58] sm:$0xff]
    %v78 = vld [vmem:[#allocation6 + $0x60] sm:$0xff]
    %v79 = vld [vmem:[#allocation6 + $0x68] sm:$0xff]
    %v80 = vld [vmem:[#allocation6 + $0x70] sm:$0xff]
    %v81 = vld [vmem:[#allocation6 + $0x78] sm:$0xff]
    %v82 = vld [vmem:[#allocation6 + $0x80] sm:$0xff]
    %v83 = vld [vmem:[#allocation6 + $0x88] sm:$0xff]
    %v84 = vld [vmem:[#allocation6 + $0x90] sm:$0xff]
    %v85 = vld [vmem:[#allocation6 + $0x98] sm:$0xff]
    %v86 = vld [vmem:[#allocation6 + $0xa0] sm:$0xff]
    %v87 = vld [vmem:[#allocation6 + $0xa8] sm:$0xff]
    %v88 = vld [vmem:[#allocation6 + $0xb0] sm:$0xff]
    %v89 = vld [vmem:[#allocation6 + $0xb8] sm:$0xff]
    %v90 = vld [vmem:[#allocation6 + $0xc0] sm:$0xff]
    %v91 = vld [vmem:[#allocation6 + $0xc8] sm:$0xff]
    %v92 = vld [vmem:[#allocation6 + $0xd0] sm:$0xff]
    %v93 = vld [vmem:[#allocation6 + $0xd8] sm:$0xff]
    %v94 = vld [vmem:[#allocation6 + $0xe0] sm:$0xff]
    %v95 = vld [vmem:[#allocation6 + $0xe8] sm:$0xff]
    %v96 = vld [vmem:[#allocation6 + $0xf0] sm:$0xff]
    %v97 = vld [vmem:[#allocation6 + $0xf8] sm:$0xff]
    %v98 = vld [vmem:[#allocation8] sm:$0x3]
    %v100 = vperm.slane %v98, 0
    %v101 = vperm.slane %v98, 1
    %104 = vmatpush.msra.mxu0 %v96
    %105 = vmatpush.msra.mxu0 %v94
    %106 = vmatpush.msra.mxu0 %v92
    %107 = vmatpush.msra.mxu0 %v90
    %108 = vmatpush.msra.mxu0 %v88
    %109 = vmatpush.msra.mxu0 %v86
    %110 = vmatpush.msra.mxu0 %v84
    %111 = vmatpush.msra.mxu0 %v82
    %112 = vmatpush.msra.mxu0 %v80
    %113 = vmatpush.msra.mxu0 %v78
    %114 = vmatpush.msra.mxu0 %v76
    %115 = vmatpush.msra.mxu0 %v74
    %116 = vmatpush.msra.mxu0 %v72
    %117 = vmatpush.msra.mxu0 %v70
    %118 = vmatpush.msra.mxu0 %v68
    %119 = vmatpush.msra.mxu0 %v66
    %120 = vmatmul.f32.gmra.mxu0 %v65
    %v121 = vpop.f32.mrf.mxu0
    %v122 = vadd.f32 %v100, %v121
    %123 = vdwg.mxu0
    %124 = vmatpush.msra.mxu0 %v97
    %125 = vmatpush.msra.mxu0 %v95
    %126 = vmatpush.msra.mxu0 %v93
    %127 = vmatpush.msra.mxu0 %v91
    %128 = vmatpush.msra.mxu0 %v89
    %129 = vmatpush.msra.mxu0 %v87
    %130 = vmatpush.msra.mxu0 %v85
    %131 = vmatpush.msra.mxu0 %v83
    %132 = vmatpush.msra.mxu0 %v81
    %133 = vmatpush.msra.mxu0 %v79
    %134 = vmatpush.msra.mxu0 %v77
    %135 = vmatpush.msra.mxu0 %v75
    %136 = vmatpush.msra.mxu0 %v73
    %137 = vmatpush.msra.mxu0 %v71
    %138 = vmatpush.msra.mxu0 %v69
    %139 = vmatpush.msra.mxu0 %v67
    %140 = vmatmul.f32.gmra.mxu0 %v65
    %v141 = vpop.f32.mrf.mxu0
    %v142 = vadd.f32 %v101, %v141
    %143 = vdwg.mxu0
    %144 = vst [vmem:[#allocation9] sm:$0xff] %v122
    %145 = vst [vmem:[#allocation9 + $0x8] sm:$0xff] %v142
    %v146 = vld [vmem:[#allocation2] sm:$0xff]
    %v147 = vlaneseq
    %v148 = vand.u32 %v147, 127
    %v149 = vmax.f32 %v146, %v122
    %v150 = vmax.f32 %v149, %v142
    %151 = vmax.xlane.f32.xlu0 %v150
    %v152 = vpop.xlane.xlu0 %151
    %vm153 = vcmp.eq.s32.totalorder %v148, 0
    %v154 = vsel %vm153, 1, 0
    %vm155 = vcmp.eq.s32.totalorder %v154, 1
    %v156 = vsel %vm155, %v152, -inf
    %vm157 = vcmp.eq.f32.partialorder %v146, %v152
    %vm158 = vcmp.eq.f32.partialorder %v122, %v152
    %vm159 = vcmp.eq.f32.partialorder %v142, %v152
    %v160 = vsel %vm157, -inf, %v146
    %v161 = vsel %vm158, -inf, %v122
    %v162 = vsel %vm159, -inf, %v142
    %v163 = vmax.f32 %v160, %v161
    %v164 = vmax.f32 %v163, %v162
    %165 = vmax.xlane.f32.xlu0 %v164
    %v166 = vpop.xlane.xlu0 %165
    %vm167 = vcmp.eq.s32.totalorder %v148, 1
    %v168 = vsel %vm167, 1, 0
    %vm169 = vcmp.eq.s32.totalorder %v168, 1
    %v170 = vsel %vm169, %v166, %v156
    %vm171 = vcmp.eq.f32.partialorder %v160, %v166
    %vm172 = vcmp.eq.f32.partialorder %v161, %v166
    %vm173 = vcmp.eq.f32.partialorder %v162, %v166
    %v174 = vsel %vm171, -inf, %v160
    %v175 = vsel %vm172, -inf, %v161
    %v176 = vsel %vm173, -inf, %v162
    %v177 = vmax.f32 %v174, %v175
    %v178 = vmax.f32 %v177, %v176
    %179 = vmax.xlane.f32.xlu0 %v178
    %v180 = vpop.xlane.xlu0 %179
    %vm181 = vcmp.eq.s32.totalorder %v148, 2
    %v182 = vsel %vm181, 1, 0
    %vm183 = vcmp.eq.s32.totalorder %v182, 1
    %v184 = vsel %vm183, %v180, %v170
    %vm185 = vcmp.eq.f32.partialorder %v174, %v180
    %vm186 = vcmp.eq.f32.partialorder %v175, %v180
    %vm187 = vcmp.eq.f32.partialorder %v176, %v180
    %v188 = vsel %vm185, -inf, %v174
    %v189 = vsel %vm186, -inf, %v175
    %v190 = vsel %vm187, -inf, %v176
    %v191 = vmax.f32 %v188, %v189
    %v192 = vmax.f32 %v191, %v190
    %193 = vmax.xlane.f32.xlu0 %v192
    %v194 = vpop.xlane.xlu0 %193
    %vm195 = vcmp.eq.s32.totalorder %v148, 3
    %v196 = vsel %vm195, 1, 0
    %vm197 = vcmp.eq.s32.totalorder %v196, 1
    %v198 = vsel %vm197, %v194, %v184
    %199 = vst [vmem:[#allocation2] sm:$0xff] %v198
    // Predicated region
    $region30: #{tpu_custom_call.1} parent=1 // pred_check
      %p200 = pneg %p60
    $region31: #{tpu_custom_call.1} parent=1 // pred_check_branch
      %202 = sbr.rel (%p200) target = $region33
    $region32: #{tpu_custom_call.1} parent=1 // pred_region
      %204 = vrot.lane.b32.xlu0 %v198, 125
      %v205 = vpop.permute.xlu0 %204
      %vm207 = vcmask 7168
      %208 = vst.msk [vmem:[%s4] sm:$0xff] %vm207, %v205
    $region33: #{tpu_custom_call.1} parent=1 // pred_fallthru
      _
    // Predicated region
    $region34: #{tpu_custom_call.1} parent=1 // pred_check
      _
    $region35: #{tpu_custom_call.1} parent=1 // pred_check_branch
      %210 = sbr.rel (0) target = $region37
    $region36: #{tpu_custom_call.1} parent=1 // pred_region
      %212 = vsyncadd [#allocation5], 0
      %s214 = sshll.u32 [#allocation9], 4
      %s215 = int_to_ptr.vmem [resolvable:$true] %s214
      %s216 = sshll.u32 %s3, 4
      %s217 = int_to_ptr.hbm [resolvable:$true] %s216
      %219 = dma.vmem_to_hbm [thread:$0]  %s215, 256, %s217, [#allocation5]
    $region37: #{tpu_custom_call.1} parent=1 // pred_fallthru
      _
    // Predicated region
    $region38: #{tpu_custom_call.1} parent=1 // pred_check
      _
    $region39: #{tpu_custom_call.1} parent=1 // pred_check_branch
      %221 = sbr.rel (0) target = $region41
    $region40: #{tpu_custom_call.1} parent=1 // pred_region
      _
    $region41: #{tpu_custom_call.1} parent=1 // pred_fallthru
      _
    // Predicated region
    $region42: #{tpu_custom_call.1} parent=1 // pred_check
      _
    $region43: #{tpu_custom_call.1} parent=1 // pred_check_branch
      %223 = sbr.rel (0) target = $region45
    $region44: #{tpu_custom_call.1} parent=1 // pred_region
      %225 = dma.done [#allocation5], 256
    $region45: #{tpu_custom_call.1} parent=1 // pred_fallthru
      _
    // Predicated region
    $region46: #{tpu_custom_call.1} parent=1 // pred_check
      _
    $region47: #{tpu_custom_call.1} parent=1 // pred_check_branch
      %227 = sbr.rel (0) target = $region49
    $region48: #{tpu_custom_call.1} parent=1 // pred_region
      _
    $region49: #{tpu_custom_call.1} parent=1 // pred_fallthru
      _
    %228 = vsyncpa [#allocation4], 1
    %229 = vsyncpa [#allocation7], 1
    %230 = vsyncpa [#allocation5], 1

</llo_original>
